<compile_context>
chip_gen: v5e
topology: v5e:2x2
jax: 0.10.0
libtpu: 0.0.40
codegen_flags: <defaults>
</compile_context>

<pallas_src>
import functools

import jax
import jax.numpy as jnp
from jax.experimental import pallas as pl
from jax.experimental.pallas import tpu as pltpu


# --------------------------------------------------------------------------- #
# Kernels
# --------------------------------------------------------------------------- #
def _apply(x_ref, o_ref, beta_q, inv_gamma_q):
    # Compute in f32 (v5e has no bf16 VPU/EUP); narrow only on store.
    x = x_ref[...].astype(jnp.float32)
    o_ref[...] = (jnp.exp(x - beta_q) * inv_gamma_q).astype(o_ref.dtype)


def _consmax_quan_kernel_smem(params_ref, x_ref, o_ref):
    # params_ref lives in SMEM: [beta_q, 1/gamma_q] (quantization pre-hoisted).
    _apply(x_ref, o_ref, params_ref[0], params_ref[1])


def _consmax_quan_kernel_const(x_ref, o_ref, *, beta_q, inv_gamma_q):
    # beta/gamma were static Python floats -> baked in as compile-time consts.
    _apply(x_ref, o_ref, beta_q, inv_gamma_q)


# --------------------------------------------------------------------------- #
# Wrapper
# --------------------------------------------------------------------------- #
_LANE_CANDIDATES = (1024, 896, 768, 640, 512, 384, 256, 128)


def _round_up(n, m):
    return ((n + m - 1) // m) * m


def _choose_block_rows(rows, row_tile):
    """Multiple-of-8 (or full-extent) row tile; >=2 grid steps when possible."""
    row_tile = max(8, (row_tile // 8) * 8)
    if rows <= 8:
        return rows                               # single full-extent block
    half = _round_up(-(-rows // 2), 8)            # ~rows/2, rounded up to 8
    return min(row_tile, half)


def consmax_quan(x, beta, gamma, *, lane_tile=1024, row_tile=1024, out_dtype=None):
    """x: arbitrary-shaped score tensor (e.g. (B, H, T, T)).
    beta, gamma: python floats or (traced) 0-d / length-1 arrays."""
    orig_shape = x.shape
    out_dtype = x.dtype if out_dtype is None else jnp.dtype(out_dtype)
    total = x.size

    # --- lane-dense 2-D view with NO pad / slice copies ----------------------
    lanes = None
    for cand in _LANE_CANDIDATES:
        if cand <= lane_tile and total % cand == 0:
            lanes = cand
            break
    if lanes is None:
        if x.ndim >= 2:
            # Collapse leading dims; last dim stays full-extent.  Pallas masks
            # the partial lane tile -> no extra HBM traffic, just masked vst.
            lanes = orig_shape[-1]
        else:
            lanes = max(total, 1)                 # tiny / awkward 1-D case
    rows = max(total // lanes, 1)
    x2 = x.reshape(rows, lanes)                   # free reshape (contiguous)

    block_rows = _choose_block_rows(rows, row_tile)
    grid = (pl.cdiv(rows, block_rows),)

    # Triple-buffer the streamed input when there is actually a pipeline.
    pipeline_mode = pl.Buffered(3) if grid[0] > 1 else None
    x_spec = pl.BlockSpec((block_rows, lanes), lambda i: (i, 0),
                          pipeline_mode=pipeline_mode)
    o_spec = pl.BlockSpec((block_rows, lanes), lambda i: (i, 0))
    cparams = pltpu.CompilerParams(
        dimension_semantics=("parallel",),        # shards across v7x's 2 TCs
        vmem_limit_bytes=32 * 1024 * 1024,        # headroom over v5e's 16 MiB default
    )
    out_shape = jax.ShapeDtypeStruct((rows, lanes), out_dtype)

    static_params = isinstance(beta, (int, float)) and isinstance(gamma, (int, float))
    if static_params:
        # Quantize on the host and close over the constants (zero SMEM reads).
        beta_q = round(float(beta) * 100.0) / 100.0
        gamma_q = round(float(gamma) * 10.0) / 10.0
        kern = functools.partial(_consmax_quan_kernel_const,
                                 beta_q=float(beta_q),
                                 inv_gamma_q=float(1.0 / gamma_q))
        out = pl.pallas_call(
            kern,
            out_shape=out_shape,
            grid_spec=pltpu.PrefetchScalarGridSpec(
                num_scalar_prefetch=0, grid=grid,
                in_specs=[x_spec], out_specs=o_spec),
            compiler_params=cparams,
        )(x2)
    else:
        # Traced (learnable) params: quantize once, ship [beta_q, 1/gamma_q]
        # as a tiny SMEM operand.  (Multiplying by 1/gamma_q differs from the
        # torch division by ~1 ulp.)
        beta_q = jnp.round(jnp.asarray(beta, jnp.float32).reshape(()) * 100.0) / 100.0
        gamma_q = jnp.round(jnp.asarray(gamma, jnp.float32).reshape(()) * 10.0) / 10.0
        params = jnp.stack([beta_q, 1.0 / gamma_q]).astype(jnp.float32)
        out = pl.pallas_call(
            _consmax_quan_kernel_smem,
            out_shape=out_shape,
            grid_spec=pltpu.PrefetchScalarGridSpec(
                num_scalar_prefetch=0, grid=grid,
                in_specs=[pl.BlockSpec(memory_space=pltpu.SMEM), x_spec],
                out_specs=o_spec),
            compiler_params=cparams,
        )(params, x2)

    return out.reshape(orig_shape)                # free reshape back


def consmax_quan_ref(x, beta, gamma):
    beta_q = jnp.round(jnp.asarray(beta, jnp.float32) * 100.0) / 100.0
    gamma_q = jnp.round(jnp.asarray(gamma, jnp.float32) * 10.0) / 10.0
    return jnp.exp(x - beta_q) / gamma_q


if __name__ == "__main__":
    key = jax.random.PRNGKey(0)

    # Deterministic parameter init (config.consmax_initial_beta/gamma defaults).
    consmax_initial_beta = 2.5
    consmax_initial_gamma = 100.0

    # 1) Attention-score-like input, static python-float params (const path).
    B, H, T = 2, 4, 16
    x = jax.random.normal(key, (B, H, T, T), dtype=jnp.float32)
    out = jax.block_until_ready(
        consmax_quan(x, consmax_initial_beta, consmax_initial_gamma))
    ref = consmax_quan_ref(x, consmax_initial_beta, consmax_initial_gamma)
    assert out.shape == x.shape and out.dtype == x.dtype
    assert jnp.allclose(out, ref, rtol=1e-5, atol=1e-6), "mismatch vs reference"

    # 2) Awkward non-multiple-of-128 shape -> collapsed (rows, last_dim) view,
    #    partial lane/edge blocks, NO pad or slice copies.
    x2 = jax.random.normal(jax.random.PRNGKey(1), (3, 5, 7, 9), dtype=jnp.float32)
    out2 = jax.block_until_ready(
        consmax_quan(x2, consmax_initial_beta, consmax_initial_gamma))
    ref2 = consmax_quan_ref(x2, consmax_initial_beta, consmax_initial_gamma)
    assert out2.shape == x2.shape
    assert jnp.allclose(out2, ref2, rtol=1e-5, atol=1e-6), "mismatch (awkward shape)"

    # 3) Learnable (array) params -> SMEM-operand path, multi-step pipelined grid.
    beta_p = jnp.array([consmax_initial_beta], dtype=jnp.float32)
    gamma_p = jnp.array([consmax_initial_gamma], dtype=jnp.float32)
    x3 = jax.random.normal(jax.random.PRNGKey(2), (2, 4, 64, 32), dtype=jnp.float32)
    out3 = jax.block_until_ready(consmax_quan(x3, beta_p, gamma_p))
    ref3 = consmax_quan_ref(x3, beta_p, gamma_p)
    assert out3.shape == x3.shape
    assert jnp.allclose(out3, ref3, rtol=1e-5, atol=1e-6), "mismatch (learnable params)"

    # TODO(synk): training-only bookkeeping (softmax_io_logging, iter_num, STE
    # backward of const_quan) is host-side module state, not part of the forward kernel.
    print("KERNEL_OK")
</pallas_src>

<mosaic_0001>
module attributes {stable_mosaic.version = 11 : i64} {
  func.func @_consmax_quan_kernel_const(%arg0: i32, %arg1: memref<2x1024xf32, #tpu.memory_space<vmem>>, %arg2: memref<2x1024xf32, #tpu.memory_space<vmem>>) attributes {dimension_semantics = [#tpu.dimension_semantics<parallel>], iteration_bounds = array<i64: 1>, scalar_prefetch = 0 : i64, scratch_operands = 0 : i64, tpu.core_type = #tpu.core_type<tc>, window_params = [{transform_indices = @transform_0, window_bounds = array<i64: 2, 1024>}, {transform_indices = @transform_1, window_bounds = array<i64: 2, 1024>}]} {
    %c0 = arith.constant 0 : index
    %c0_0 = arith.constant 0 : index
    %0 = vector.load %arg1[%c0, %c0_0] : memref<2x1024xf32, #tpu.memory_space<vmem>>, vector<2x1024xf32>
    %cst = arith.constant 2.500000e+00 : f32
    %1 = vector.broadcast %cst : f32 to vector<2x1024xf32>
    %2 = arith.subf %0, %1 : vector<2x1024xf32>
    %3 = math.exp %2 : vector<2x1024xf32>
    %cst_1 = arith.constant 0.00999999977 : f32
    %4 = vector.broadcast %cst_1 : f32 to vector<2x1024xf32>
    %5 = arith.mulf %3, %4 : vector<2x1024xf32>
    %c0_2 = arith.constant 0 : index
    %c0_3 = arith.constant 0 : index
    %6 = vector.load %arg2[%c0_2, %c0_3] : memref<2x1024xf32, #tpu.memory_space<vmem>>, vector<2x1024xf32>
    tpu.vector_store %arg2[%c0_2, %c0_3], %5 {strides = array<i32>} : memref<2x1024xf32, #tpu.memory_space<vmem>>, vector<2x1024xf32>,
    return
  }
  func.func @transform_0(%arg0: i32) -> (i32, i32) {
    %c0_i32 = arith.constant 0 : i32
    %c0_i32_0 = arith.constant 0 : i32
    return %arg0, %c0_i32 : i32, i32
  }
  func.func @transform_1(%arg0: i32) -> (i32, i32) {
    %c0_i32 = arith.constant 0 : i32
    %c0_i32_0 = arith.constant 0 : i32
    return %arg0, %c0_i32 : i32, i32
  }
}

</mosaic_0001>

<llo_original>
// kernel: tpu_custom_call.1
$region0: #{tpu_custom_call.1}
  #allocation0 [shape = 'u32[]', space=smem, size = 0x4, offset = 0x4, fixed_abs, tag = 'smem constant byte address 0x4 - core index']
  #allocation1 [shape = 'u32[72,128]{1,0:T(1,128)}', space=vmem, size = 0x9000, scoped, tag = 'internal scratch']
  %s0 = inlined_call_operand.hbm [shape: f32[2,1024], index: 0, kind: input, shape index: {}]
  %s1 = inlined_call_operand.hbm [shape: f32[2,1024], index: 1, kind: output, shape index: {}]
  %s2 = sld [smem:[#allocation0]]
  $region18: #{tpu_custom_call.1} parent=0
    _
  %s4 = ssub.s32 1, %s2
  %s5 = scalar_select 0, %s4, %s2
  $region1: #{tpu_custom_call.1} parent=0
    #allocation2 [shape = 'u8[8192]{0}', space=vmem, size = 0x2000, scoped, tag = 'input window, operand 0, single buffered']
    #allocation3 [shape = 's32[1]{0}', space=sflag, size = 0x4, scoped, tag = 'scoped memory for tpu_custom_call.1']
    #allocation4 [shape = 's32[1]{0}', space=sflag, size = 0x4, scoped, tag = 'scoped memory for tpu_custom_call.1']
    #allocation5 [shape = 'u8[8192]{0}', space=vmem, size = 0x2000, scoped, tag = 'output window, operand 0, single buffered']
    %6 = vsyncpa [#allocation3], 0
    %7 = vsyncpa [#allocation4], 0
    // Predicated region
    $region2: #{tpu_custom_call.1} parent=1 // pred_check
      _
    $region3: #{tpu_custom_call.1} parent=1 // pred_check_branch
      %9 = sbr.rel (0) target = $region5
    $region4: #{tpu_custom_call.1} parent=1 // pred_region
      %11 = vsyncadd [#allocation3], 0
      %s13 = sshll.u32 %s0, 4
      %s14 = int_to_ptr.hbm [resolvable:$true] %s13
      %s15 = sshll.u32 [#allocation2], 4
      %s16 = int_to_ptr.vmem [resolvable:$true] %s15
      %18 = dma.hbm_to_vmem [thread:$0]  %s14, 256, %s16, [#allocation3]
    $region5: #{tpu_custom_call.1} parent=1 // pred_fallthru
      _
    // Predicated region
    $region6: #{tpu_custom_call.1} parent=1 // pred_check
      _
    $region7: #{tpu_custom_call.1} parent=1 // pred_check_branch
      %20 = sbr.rel (0) target = $region9
    $region8: #{tpu_custom_call.1} parent=1 // pred_region
      %22 = dma.done [#allocation3], 256
    $region9: #{tpu_custom_call.1} parent=1 // pred_fallthru
      _
    %v23 = vld [vmem:[#allocation2] sm:$0xff]
    %v24 = vld [vmem:[#allocation2 + $0x8] sm:$0xff]
    %v25 = vsub.f32 %v23, 2.5
    %v26 = vsub.f32 %v24, 2.5
    %v27 = vmul.f32 %v25, 1.442695
    %v28 = vpow.pop %v27
    %v29 = vmul.f32 %v26, 1.442695
    %v30 = vpow.pop %v29
    %v31 = vmul.f32 %v28, 0.01
    %v32 = vmul.f32 %v30, 0.01
    %33 = vst [vmem:[#allocation5] sm:$0xff] %v31
    %34 = vst [vmem:[#allocation5 + $0x8] sm:$0xff] %v32
    // Predicated region
    $region10: #{tpu_custom_call.1} parent=1 // pred_check
      _
    $region11: #{tpu_custom_call.1} parent=1 // pred_check_branch
      %36 = sbr.rel (0) target = $region13
    $region12: #{tpu_custom_call.1} parent=1 // pred_region
      %38 = vsyncadd [#allocation4], 0
      %s40 = sshll.u32 [#allocation5], 4
      %s41 = int_to_ptr.vmem [resolvable:$true] %s40
      %s42 = sshll.u32 %s1, 4
      %s43 = int_to_ptr.hbm [resolvable:$true] %s42
      %45 = dma.vmem_to_hbm [thread:$0]  %s41, 256, %s43, [#allocation4]
    $region13: #{tpu_custom_call.1} parent=1 // pred_fallthru
      _
    // Predicated region
    $region14: #{tpu_custom_call.1} parent=1 // pred_check
      _
    $region15: #{tpu_custom_call.1} parent=1 // pred_check_branch
      %47 = sbr.rel (0) target = $region17
    $region16: #{tpu_custom_call.1} parent=1 // pred_region
      %49 = dma.done [#allocation4], 256
    $region17: #{tpu_custom_call.1} parent=1 // pred_fallthru
      _
    %50 = vsyncpa [#allocation3], 1
    %51 = vsyncpa [#allocation4], 1

</llo_original>
